<compile_context>
chip_gen: v7x
topology: tpu7x:2x2x1
jax: 0.10.0
libtpu: 0.0.40
codegen_flags: <defaults>
</compile_context>

<pallas_src>
import functools

import jax
import jax.numpy as jnp
from jax.experimental import pallas as pl
from jax.experimental.pallas import tpu as pltpu


def _round_up(x, m):
    return (x + m - 1) // m * m


def _leaky_relu(x, negative_slope=0.01):
    # nn.LeakyReLU default negative_slope = 0.01 (maximum form: free on VPU).
    return jnp.maximum(x, negative_slope * x)


def _lane_block_bytes(rows, cols, itemsize):
    """VMEM footprint of one (rows, cols) block after sublane/lane padding."""
    return _round_up(max(rows, 1), 8) * _round_up(max(cols, 1), 128) * itemsize


def _invariant_spec(rows, cols):
    """Grid-invariant operand: same block every step; single-buffer if supported."""
    idx = lambda i: (0, 0)
    if hasattr(pl, "Buffered"):
        try:
            return pl.BlockSpec((rows, cols), idx,
                                pipeline_mode=pl.Buffered(buffer_count=1))
        except TypeError:
            pass
    return pl.BlockSpec((rows, cols), idx)


# --------------------------- one-off weight folding ---------------------------

def prepare_richid_params(params, *, matmul_dtype=jnp.float32):
    """Fold the all-linear tail into fused weights.

    Run once per parameter update (off the per-call hot path).  Folding is done
    in f32; only the final fused weights are cast to `matmul_dtype` (bf16
    recommended on v6e/v7x).  Biases stay f32 (f32 accumulation in-kernel).
    """
    P = jax.lax.Precision.HIGHEST

    W1t = params["h_w1"].T                                        # (OBS, S)
    b1 = params["h_b1"][None, :]                                  # (1, S)
    Mkt = params["hat_M_k"].T                                     # (S, OUT)

    W_tail = jnp.matmul(params["h_w2"].T, params["m_w"].T, precision=P)
    b_tail = jnp.matmul(params["h_b2"], params["m_w"].T, precision=P) \
        + params["m_b"]                                           # (S,)

    AkMk = jnp.matmul(params["hat_A_k"].T, Mkt, precision=P)      # (S, OUT)
    abk = jnp.matmul(params["hat_A_k_1"],
                     jnp.matmul(params["hat_B"], params["hat_K"], precision=P),
                     precision=P)
    abkMk = jnp.matmul(abk.T, Mkt, precision=P)                   # (S, OUT)

    W_K = jnp.matmul(W_tail, Mkt, precision=P)                    # (S, OUT)
    W_nY = -jnp.matmul(W_tail, AkMk, precision=P)                 # (S, OUT)
    W_s = -jnp.matmul(params["f_w"].T, abkMk, precision=P)        # (T*OBS, OUT)
    b_out = (jnp.matmul(b_tail, Mkt, precision=P)
             - jnp.matmul(b_tail, AkMk, precision=P)
             - jnp.matmul(params["f_b"], abkMk, precision=P))[None, :]

    dt = matmul_dtype
    return {
        "W1t": W1t.astype(dt),
        "b1": b1.astype(jnp.float32),
        "W_K": W_K.astype(dt),
        "W_nY": W_nY.astype(dt),
        "W_s": W_s.astype(dt),
        "b_out": b_out.astype(jnp.float32),
    }


# --------------------------------- kernel ------------------------------------

def richid_kernel(kobs_ref, seq_ref, w1_ref, b1_ref, wk_ref, wny_ref, ws_ref,
                  bo_ref, out_ref, *, y_off, obs_dim):
    """One batch tile of the fused RichIDHTKModel forward.

    kobs_ref : (tb, OBS)      k-step observation
    seq_ref  : (tb, T*OBS)    flattened observation sequence (y_t = last OBS cols)
    w1_ref   : (OBS, S)       first-layer weight (transposed)
    b1_ref   : (1, S)         first-layer bias
    wk_ref   : (S, OUT)       fused tail weight for the k-step branch
    wny_ref  : (S, OUT)       fused tail weight for the y_t branch (sign folded)
    ws_ref   : (T*OBS, OUT)   fused tail weight for the hat_f branch (sign folded)
    bo_ref   : (1, OUT)       fused output bias
    out_ref  : (tb, OUT)      unpadded output
    """
    wdt = w1_ref.dtype
    seq = seq_ref[...]
    y_t = seq[:, y_off:y_off + obs_dim]                  # no duplicated y_t DMA

    hk = jnp.dot(kobs_ref[...].astype(wdt), w1_ref[...],
                 preferred_element_type=jnp.float32)
    hk = _leaky_relu(hk + b1_ref[...])
    hy = jnp.dot(y_t.astype(wdt), w1_ref[...],
                 preferred_element_type=jnp.float32)
    hy = _leaky_relu(hy + b1_ref[...])

    acc = jnp.dot(hk.astype(wdt), wk_ref[...], preferred_element_type=jnp.float32)
    acc = acc + jnp.dot(hy.astype(wdt), wny_ref[...],
                        preferred_element_type=jnp.float32)
    acc = acc + jnp.dot(seq.astype(wdt), ws_ref[...],
                        preferred_element_type=jnp.float32)
    out_ref[...] = (acc + bo_ref[...]).astype(out_ref.dtype)


# -------------------------------- wrapper -------------------------------------

def richid_forward(curr_obs_seq, k_step_obs, prep, *, tb=None,
                   tb_cap=4096, vmem_block_budget_bytes=40 << 20):
    """Forward pass.  `prep` comes from prepare_richid_params (cached)."""
    B, T, OBS = curr_obs_seq.shape
    S = prep["W1t"].shape[1]
    OUT = prep["W_K"].shape[1]
    w_itemsize = prep["W1t"].dtype.itemsize
    act_itemsize = 4                      # activations stay f32 (no converts)

    seq_flat = curr_obs_seq.reshape(B, T * OBS)   # free (contiguous) reshape

    # ---- batch tile: sized from VMEM, >=2 even tiles for v7x when possible ----
    weight_bytes = (_lane_block_bytes(OBS, S, w_itemsize)
                    + 2 * _lane_block_bytes(S, OUT, w_itemsize)
                    + _lane_block_bytes(T * OBS, OUT, w_itemsize)
                    + _lane_block_bytes(1, S, 4)
                    + _lane_block_bytes(1, OUT, 4))
    per_row = (_round_up(OBS, 128) + _round_up(T * OBS, 128)) * act_itemsize \
        + _round_up(OUT, 128) * 4
    cap = max(vmem_block_budget_bytes - weight_bytes, 0) // (2 * per_row)
    cap = max(16, min(tb_cap, (cap // 16) * 16))

    Bp0 = _round_up(B, 16)
    if tb is None:
        tb = min(cap, Bp0)
        if Bp0 >= 32:
            # v7x: at least 2 tiles so both TensorCores get work; prefer an
            # even tile count for load balance.
            tb = min(tb, _round_up(pl.cdiv(Bp0, 2), 16))
            ntiles = pl.cdiv(Bp0, tb)
            if ntiles > 1 and ntiles % 2 == 1:
                tb = _round_up(pl.cdiv(Bp0, ntiles + 1), 16)
    tb = max(16, _round_up(int(tb), 16))          # 16-row tiles (bf16 sublane pack)
    Bp = _round_up(Bp0, tb)

    if Bp != B:
        k_step_obs = jnp.pad(k_step_obs, ((0, Bp - B), (0, 0)))
        seq_flat = jnp.pad(seq_flat, ((0, Bp - B), (0, 0)))

    # ---- VMEM limit computed from the actual block sizes (v5e 16 MiB default) ----
    block_bytes = (2 * _lane_block_bytes(tb, OBS, act_itemsize)
                   + 2 * _lane_block_bytes(tb, T * OBS, act_itemsize)
                   + 2 * _lane_block_bytes(tb, OUT, 4)
                   + weight_bytes)
    vmem_limit = int(min(max(block_bytes + (4 << 20), 16 << 20), 112 << 20))

    grid = (Bp // tb,)
    kernel = functools.partial(richid_kernel, y_off=(T - 1) * OBS, obs_dim=OBS)

    def batched(cols):
        return pl.BlockSpec((tb, cols), lambda i: (i, 0))

    out = pl.pallas_call(
        kernel,
        out_shape=jax.ShapeDtypeStruct((Bp, OUT), jnp.float32),
        grid=grid,
        in_specs=[
            batched(OBS),                    # k_step_obs
            batched(T * OBS),                # flattened observation sequence
            _invariant_spec(OBS, S),         # W1^T
            _invariant_spec(1, S),           # b1
            _invariant_spec(S, OUT),         # fused W_K
            _invariant_spec(S, OUT),         # fused -W_Y
            _invariant_spec(T * OBS, OUT),   # fused -W_SEQ
            _invariant_spec(1, OUT),         # fused output bias
        ],
        out_specs=pl.BlockSpec((tb, OUT), lambda i: (i, 0)),
        compiler_params=pltpu.CompilerParams(
            dimension_semantics=("parallel",),
            vmem_limit_bytes=vmem_limit),
    )(k_step_obs, seq_flat, prep["W1t"], prep["b1"], prep["W_K"],
      prep["W_nY"], prep["W_s"], prep["b_out"])

    return out if Bp == B else out[:B]


# ----------------------------- pure-JAX reference -----------------------------

def richid_forward_ref(curr_obs_seq, k_step_obs, params):
    """Unfused reference mirroring the PyTorch forward."""
    B, T, OBS = curr_obs_seq.shape
    P = jax.lax.Precision.HIGHEST

    def h_val(x):
        h = jnp.matmul(x, params["h_w1"].T, precision=P) + params["h_b1"]
        h = _leaky_relu(h)
        h = jnp.matmul(h, params["h_w2"].T, precision=P) + params["h_b2"]
        return jnp.matmul(h, params["m_w"].T, precision=P) + params["m_b"]

    y_t = curr_obs_seq[:, -1, :]
    embed_y_t_k = h_val(k_step_obs)
    embed_y_t = h_val(y_t)
    embed_y_0_t = jnp.matmul(curr_obs_seq.reshape(B, -1), params["f_w"].T,
                             precision=P) + params["f_b"]
    abk = jnp.matmul(params["hat_A_k_1"],
                     jnp.matmul(params["hat_B"], params["hat_K"], precision=P),
                     precision=P)
    out = (embed_y_t_k
           - jnp.matmul(embed_y_t, params["hat_A_k"].T, precision=P)
           - jnp.matmul(embed_y_0_t, abk.T, precision=P))
    return jnp.matmul(out, params["hat_M_k"].T, precision=P)


if __name__ == "__main__":
    B = 64           # batch (small, but enough for 2 parallel tiles)
    T = 8            # sequence length
    OBS = 32         # obs_dim
    S = 32           # state_dim
    ACT = 4          # action_dim
    K = 4            # k steps
    OUT = K * ACT    # hat_M_k output dim

    key = jax.random.PRNGKey(0)
    ks = jax.random.split(key, 16)

    def rnd(k, shape, scale=0.1):
        return (scale * jax.random.normal(k, shape)).astype(jnp.float32)

    params = {
        # h_model
        "h_w1": rnd(ks[0], (S, OBS)),
        "h_b1": rnd(ks[1], (S,)),
        "h_w2": rnd(ks[2], (S, S)),
        "h_b2": rnd(ks[3], (S,)),
        # m_layer
        "m_w": rnd(ks[4], (S, S)),
        "m_b": rnd(ks[5], (S,)),
        # hat_f instantiated as an affine map over the flattened sequence
        "f_w": rnd(ks[6], (S, T * OBS)),
        "f_b": rnd(ks[7], (S,)),
        # system matrices
        "hat_A_k_1": rnd(ks[8], (S, S)),
        "hat_A_k": rnd(ks[9], (S, S)),
        "hat_B": rnd(ks[10], (S, S)),
        "hat_K": rnd(ks[11], (S, S)),
        "hat_M_k": rnd(ks[12], (OUT, S)),
    }

    curr_obs_seq = rnd(ks[13], (B, T, OBS), scale=1.0)
    k_step_obs = rnd(ks[14], (B, OBS), scale=1.0)

    ref = richid_forward_ref(curr_obs_seq, k_step_obs, params)

    # f32 fused weights (folded once, off the hot path), auto tile -> grid=(2,)
    # so both v7x TensorCores are used.
    prep_f32 = prepare_richid_params(params)
    out_f32 = jax.block_until_ready(
        richid_forward(curr_obs_seq, k_step_obs, prep_f32))
    assert out_f32.shape == (B, OUT)
    assert jnp.allclose(out_f32, ref, atol=1e-3, rtol=1e-3), "f32 mismatch"

    # Ragged batch exercises the padding path.
    out_rag = jax.block_until_ready(
        richid_forward(curr_obs_seq[:50], k_step_obs[:50], prep_f32))
    assert out_rag.shape == (50, OUT)
    assert jnp.allclose(out_rag, ref[:50], atol=1e-3, rtol=1e-3), "ragged mismatch"

    # bf16 fused weights (cast once here, cached); activations stay f32 in HBM
    # and are cast on-VPU inside the kernel; accumulation stays f32.
    prep_bf16 = prepare_richid_params(params, matmul_dtype=jnp.bfloat16)
    out_bf16 = jax.block_until_ready(
        richid_forward(curr_obs_seq, k_step_obs, prep_bf16, tb=32))
    assert out_bf16.shape == (B, OUT)
    assert jnp.allclose(out_bf16, ref, atol=5e-2, rtol=5e-2), "bf16 mismatch"

    print("KERNEL_OK")
</pallas_src>

<mosaic_0001>
module attributes {stable_mosaic.version = 11 : i64} {
  func.func @richid_kernel(%arg0: i32, %arg1: memref<32x32xf32, #tpu.memory_space<vmem>>, %arg2: memref<32x256xf32, #tpu.memory_space<vmem>>, %arg3: memref<32x32xf32, #tpu.memory_space<vmem>>, %arg4: memref<1x32xf32, #tpu.memory_space<vmem>>, %arg5: memref<32x16xf32, #tpu.memory_space<vmem>>, %arg6: memref<32x16xf32, #tpu.memory_space<vmem>>, %arg7: memref<256x16xf32, #tpu.memory_space<vmem>>, %arg8: memref<1x16xf32, #tpu.memory_space<vmem>>, %arg9: memref<32x16xf32, #tpu.memory_space<vmem>>) attributes {dimension_semantics = [#tpu.dimension_semantics<parallel>], iteration_bounds = array<i64: 2>, scalar_prefetch = 0 : i64, scratch_operands = 0 : i64, tpu.core_type = #tpu.core_type<tc>, window_params = [{transform_indices = @transform_0, window_bounds = array<i64: 32, 32>}, {transform_indices = @transform_1, window_bounds = array<i64: 32, 256>}, {pipeline_mode = #tpu.pipeline_mode<synchronous>, transform_indices = @transform_2, window_bounds = array<i64: 32, 32>}, {pipeline_mode = #tpu.pipeline_mode<synchronous>, transform_indices = @transform_3, window_bounds = array<i64: 1, 32>}, {pipeline_mode = #tpu.pipeline_mode<synchronous>, transform_indices = @transform_4, window_bounds = array<i64: 32, 16>}, {pipeline_mode = #tpu.pipeline_mode<synchronous>, transform_indices = @transform_5, window_bounds = array<i64: 32, 16>}, {pipeline_mode = #tpu.pipeline_mode<synchronous>, transform_indices = @transform_6, window_bounds = array<i64: 256, 16>}, {pipeline_mode = #tpu.pipeline_mode<synchronous>, transform_indices = @transform_7, window_bounds = array<i64: 1, 16>}, {transform_indices = @transform_8, window_bounds = array<i64: 32, 16>}]} {
    %c0 = arith.constant 0 : index
    %c0_0 = arith.constant 0 : index
    %0 = vector.load %arg2[%c0, %c0_0] : memref<32x256xf32, #tpu.memory_space<vmem>>, vector<32x256xf32>
    %1 = vector.extract_strided_slice %0 {offsets = [0, 224], sizes = [32, 32], strides = [1, 1]} : vector<32x256xf32> to vector<32x32xf32>
    %c0_1 = arith.constant 0 : index
    %c0_2 = arith.constant 0 : index
    %2 = vector.load %arg1[%c0_1, %c0_2] : memref<32x32xf32, #tpu.memory_space<vmem>>, vector<32x32xf32>
    %c0_3 = arith.constant 0 : index
    %c0_4 = arith.constant 0 : index
    %3 = vector.load %arg3[%c0_3, %c0_4] : memref<32x32xf32, #tpu.memory_space<vmem>>, vector<32x32xf32>
    %cst = arith.constant dense<0.000000e+00> : vector<32x32xf32>
    %4 = tpu.matmul %2, %3, %cst {dimension_numbers = #tpu.dot_dimension_numbers<[1], [0], [0], [1], [0, 0, 1, 1], [], []>} : vector<32x32xf32>, vector<32x32xf32>, vector<32x32xf32> -> vector<32x32xf32>
    %c0_5 = arith.constant 0 : index
    %c0_6 = arith.constant 0 : index
    %5 = vector.load %arg4[%c0_5, %c0_6] : memref<1x32xf32, #tpu.memory_space<vmem>>, vector<1x32xf32>
    %6 = vector.broadcast %5 : vector<1x32xf32> to vector<32x32xf32>
    %7 = arith.addf %4, %6 : vector<32x32xf32>
    %cst_7 = arith.constant 0.00999999977 : f32
    %8 = vector.broadcast %cst_7 : f32 to vector<32x32xf32>
    %9 = arith.mulf %8, %7 : vector<32x32xf32>
    %10 = arith.maximumf %7, %9 : vector<32x32xf32>
    %c0_8 = arith.constant 0 : index
    %c0_9 = arith.constant 0 : index
    %11 = vector.load %arg3[%c0_8, %c0_9] : memref<32x32xf32, #tpu.memory_space<vmem>>, vector<32x32xf32>
    %cst_10 = arith.constant dense<0.000000e+00> : vector<32x32xf32>
    %12 = tpu.matmul %1, %11, %cst_10 {dimension_numbers = #tpu.dot_dimension_numbers<[1], [0], [0], [1], [0, 0, 1, 1], [], []>} : vector<32x32xf32>, vector<32x32xf32>, vector<32x32xf32> -> vector<32x32xf32>
    %c0_11 = arith.constant 0 : index
    %c0_12 = arith.constant 0 : index
    %13 = vector.load %arg4[%c0_11, %c0_12] : memref<1x32xf32, #tpu.memory_space<vmem>>, vector<1x32xf32>
    %14 = vector.broadcast %13 : vector<1x32xf32> to vector<32x32xf32>
    %15 = arith.addf %12, %14 : vector<32x32xf32>
    %cst_13 = arith.constant 0.00999999977 : f32
    %16 = vector.broadcast %cst_13 : f32 to vector<32x32xf32>
    %17 = arith.mulf %16, %15 : vector<32x32xf32>
    %18 = arith.maximumf %15, %17 : vector<32x32xf32>
    %c0_14 = arith.constant 0 : index
    %c0_15 = arith.constant 0 : index
    %19 = vector.load %arg5[%c0_14, %c0_15] : memref<32x16xf32, #tpu.memory_space<vmem>>, vector<32x16xf32>
    %cst_16 = arith.constant dense<0.000000e+00> : vector<32x16xf32>
    %20 = tpu.matmul %10, %19, %cst_16 {dimension_numbers = #tpu.dot_dimension_numbers<[1], [0], [0], [1], [0, 0, 1, 1], [], []>} : vector<32x32xf32>, vector<32x16xf32>, vector<32x16xf32> -> vector<32x16xf32>
    %c0_17 = arith.constant 0 : index
    %c0_18 = arith.constant 0 : index
    %21 = vector.load %arg6[%c0_17, %c0_18] : memref<32x16xf32, #tpu.memory_space<vmem>>, vector<32x16xf32>
    %cst_19 = arith.constant dense<0.000000e+00> : vector<32x16xf32>
    %22 = tpu.matmul %18, %21, %cst_19 {dimension_numbers = #tpu.dot_dimension_numbers<[1], [0], [0], [1], [0, 0, 1, 1], [], []>} : vector<32x32xf32>, vector<32x16xf32>, vector<32x16xf32> -> vector<32x16xf32>
    %23 = arith.addf %20, %22 : vector<32x16xf32>
    %c0_20 = arith.constant 0 : index
    %c0_21 = arith.constant 0 : index
    %24 = vector.load %arg7[%c0_20, %c0_21] : memref<256x16xf32, #tpu.memory_space<vmem>>, vector<256x16xf32>
    %cst_22 = arith.constant dense<0.000000e+00> : vector<32x16xf32>
    %25 = tpu.matmul %0, %24, %cst_22 {dimension_numbers = #tpu.dot_dimension_numbers<[1], [0], [0], [1], [0, 0, 1, 1], [], []>} : vector<32x256xf32>, vector<256x16xf32>, vector<32x16xf32> -> vector<32x16xf32>
    %26 = arith.addf %23, %25 : vector<32x16xf32>
    %c0_23 = arith.constant 0 : index
    %c0_24 = arith.constant 0 : index
    %27 = vector.load %arg8[%c0_23, %c0_24] : memref<1x16xf32, #tpu.memory_space<vmem>>, vector<1x16xf32>
    %28 = vector.broadcast %27 : vector<1x16xf32> to vector<32x16xf32>
    %29 = arith.addf %26, %28 : vector<32x16xf32>
    %c0_25 = arith.constant 0 : index
    %c0_26 = arith.constant 0 : index
    %30 = vector.load %arg9[%c0_25, %c0_26] : memref<32x16xf32, #tpu.memory_space<vmem>>, vector<32x16xf32>
    tpu.vector_store %arg9[%c0_25, %c0_26], %29 {strides = array<i32>} : memref<32x16xf32, #tpu.memory_space<vmem>>, vector<32x16xf32>,
    return
  }
  func.func @transform_0(%arg0: i32) -> (i32, i32) {
    %c0_i32 = arith.constant 0 : i32
    %c0_i32_0 = arith.constant 0 : i32
    return %arg0, %c0_i32 : i32, i32
  }
  func.func @transform_1(%arg0: i32) -> (i32, i32) {
    %c0_i32 = arith.constant 0 : i32
    %c0_i32_0 = arith.constant 0 : i32
    return %arg0, %c0_i32 : i32, i32
  }
  func.func @transform_2(%arg0: i32) -> (i32, i32) {
    %c0_i32 = arith.constant 0 : i32
    %c0_i32_0 = arith.constant 0 : i32
    %c0_i32_1 = arith.constant 0 : i32
    return %c0_i32, %c0_i32_0 : i32, i32
  }
  func.func @transform_3(%arg0: i32) -> (i32, i32) {
    %c0_i32 = arith.constant 0 : i32
    %c0_i32_0 = arith.constant 0 : i32
    %c0_i32_1 = arith.constant 0 : i32
    return %c0_i32, %c0_i32_0 : i32, i32
  }
  func.func @transform_4(%arg0: i32) -> (i32, i32) {
    %c0_i32 = arith.constant 0 : i32
    %c0_i32_0 = arith.constant 0 : i32
    %c0_i32_1 = arith.constant 0 : i32
    return %c0_i32, %c0_i32_0 : i32, i32
  }
  func.func @transform_5(%arg0: i32) -> (i32, i32) {
    %c0_i32 = arith.constant 0 : i32
    %c0_i32_0 = arith.constant 0 : i32
    %c0_i32_1 = arith.constant 0 : i32
    return %c0_i32, %c0_i32_0 : i32, i32
  }
  func.func @transform_6(%arg0: i32) -> (i32, i32) {
    %c0_i32 = arith.constant 0 : i32
    %c0_i32_0 = arith.constant 0 : i32
    %c0_i32_1 = arith.constant 0 : i32
    return %c0_i32, %c0_i32_0 : i32, i32
  }
  func.func @transform_7(%arg0: i32) -> (i32, i32) {
    %c0_i32 = arith.constant 0 : i32
    %c0_i32_0 = arith.constant 0 : i32
    %c0_i32_1 = arith.constant 0 : i32
    return %c0_i32, %c0_i32_0 : i32, i32
  }
  func.func @transform_8(%arg0: i32) -> (i32, i32) {
    %c0_i32 = arith.constant 0 : i32
    %c0_i32_0 = arith.constant 0 : i32
    return %arg0, %c0_i32 : i32, i32
  }
}

</mosaic_0001>

<llo_original>
// kernel: tpu_custom_call.1
$region0: #{tpu_custom_call.1}
  #allocation0 [shape = 'u32[]', space=smem, size = 0x4, offset = 0x4, fixed_abs, tag = 'smem constant byte address 0x4 - core index']
  #allocation1 [shape = 'u32[144,128]{1,0:T(1,128)}', space=vmem, size = 0x12000, scoped, tag = 'internal scratch']
  %s0 = inlined_call_operand.vmem [shape: f32[64,32], index: 0, kind: input, shape index: {}]
  %s1 = inlined_call_operand.vmem [shape: f32[64,256], index: 1, kind: input, shape index: {}]
  %s2 = inlined_call_operand.vmem [shape: f32[32,32], index: 2, kind: input, shape index: {}]
  %s3 = inlined_call_operand.vmem [shape: f32[1,32], index: 3, kind: input, shape index: {}]
  %s4 = inlined_call_operand.vmem [shape: f32[32,16], index: 4, kind: input, shape index: {}]
  %s5 = inlined_call_operand.vmem [shape: f32[32,16], index: 5, kind: input, shape index: {}]
  %s6 = inlined_call_operand.vmem [shape: f32[256,16], index: 6, kind: input, shape index: {}]
  %s7 = inlined_call_operand.vmem [shape: f32[1,16], index: 7, kind: input, shape index: {}]
  %s8 = inlined_call_operand.vmem [shape: f32[64,16], index: 8, kind: output, shape index: {}]
  %s9 = sld [smem:[#allocation0]]
  $region65: #{tpu_custom_call.1} parent=0
    _
  %s11 = ssub.s32 1, %s9
  %s12 = scalar_select 0, %s11, %s9
  loop: start=0, step=1, limit=4
  $region2: #{tpu_custom_call.1} parent=0 // loop_pre_header
    _
  $region3: #{tpu_custom_call.1} parent=0 // loop_header
    %s14 = sphi 0, %s18
    %p15 = scmp.ge.s32.totalorder %s14, 4
    %s24 = sphi 0, %s26
    %s27 = sphi 0, %s24
    %s28 = sphi 0, %s27
    %s44 = sphi 0, %s28
    %s50 = sphi 0, %s52
    %s53 = sphi 0, %s50
    %s54 = sphi 0, %s53
    %s70 = sphi 0, %s54
    %s74 = sphi 0, %s74
    %s76 = sphi 0, %s74
    %s77 = sphi 0, %s76
    %s91 = sphi 0, %s77
    %s95 = sphi 0, %s95
    %s97 = sphi 0, %s95
    %s98 = sphi 0, %s97
    %s112 = sphi 0, %s98
    %s116 = sphi 0, %s116
    %s118 = sphi 0, %s116
    %s119 = sphi 0, %s118
    %s133 = sphi 0, %s119
    %s137 = sphi 0, %s137
    %s139 = sphi 0, %s137
    %s140 = sphi 0, %s139
    %s154 = sphi 0, %s140
    %s158 = sphi 0, %s158
    %s160 = sphi 0, %s158
    %s161 = sphi 0, %s160
    %s175 = sphi 0, %s161
    %s179 = sphi 0, %s179
    %s181 = sphi 0, %s179
    %s182 = sphi 0, %s181
    %s196 = sphi 0, %s182
    %s202 = sphi 0, %s204
    %s205 = sphi 0, %s202
    %s206 = sphi 0, %s205
    %s222 = sphi 0, %s206
  $region4: #{tpu_custom_call.1} parent=0 // loop_header_branch
    %17 = sbr.rel (%p15) target = $region8
  $region5: #{tpu_custom_call.1} parent=0 // loop_body
    %s19 = ssub.s32 %s14, 1
    %s20 = ssub.s32 %s14, 2
    %s21 = sadd.s32 %s14, 1
    %s22 = ssub.s32 %s14, %s21
    %p23 = scmp.eq.s32.totalorder %s22, 0
    %s25 = sadd.s32 %s24, 1
    %s26 = scalar_select %p23, %s24, %s25
    %p29 = pneg %p23
    %p30 = scmp.eq.s32.totalorder %s14, 1
    %p31 = por %p29, %p30
    %p32 = scmp.ne.s32.totalorder %s24, %s27
    %p33 = scmp.eq.s32.totalorder %s14, 0
    %p34 = por %p32, %p33
    %p35 = scmp.ne.s32.totalorder %s24, %s27
    %p36 = scmp.eq.s32.totalorder %s19, 1
    %p37 = por %p35, %p36
    %p38 = scmp.ne.s32.totalorder %s27, %s28
    %p39 = scmp.eq.s32.totalorder %s19, 0
    %p40 = por %p38, %p39
    %p41 = scmp.ne.s32.totalorder %s27, %s28
    %p42 = scmp.eq.s32.totalorder %s20, 1
    %p43 = por %p41, %p42
    %p45 = scmp.ne.s32.totalorder %s28, %s44
    %p46 = scmp.eq.s32.totalorder %s20, 0
    %p47 = por %p45, %p46
    %s48 = ssub.s32 %s14, %s21
    %p49 = scmp.eq.s32.totalorder %s48, 0
    %s51 = sadd.s32 %s50, 1
    %s52 = scalar_select %p49, %s50, %s51
    %p55 = pneg %p49
    %p56 = scmp.eq.s32.totalorder %s14, 1
    %p57 = por %p55, %p56
    %p58 = scmp.ne.s32.totalorder %s50, %s53
    %p59 = scmp.eq.s32.totalorder %s14, 0
    %p60 = por %p58, %p59
    %p61 = scmp.ne.s32.totalorder %s50, %s53
    %p62 = scmp.eq.s32.totalorder %s19, 1
    %p63 = por %p61, %p62
    %p64 = scmp.ne.s32.totalorder %s53, %s54
    %p65 = scmp.eq.s32.totalorder %s19, 0
    %p66 = por %p64, %p65
    %p67 = scmp.ne.s32.totalorder %s53, %s54
    %p68 = scmp.eq.s32.totalorder %s20, 1
    %p69 = por %p67, %p68
    %p71 = scmp.ne.s32.totalorder %s54, %s70
    %p72 = scmp.eq.s32.totalorder %s20, 0
    %p73 = por %p71, %p72
    %s75 = sadd.s32 %s74, 1
    %p78 = scmp.eq.s32.totalorder %s14, 1
    %p79 = scmp.ne.s32.totalorder %s74, %s76
    %p80 = scmp.eq.s32.totalorder %s14, 0
    %p81 = por %p79, %p80
    %p82 = scmp.ne.s32.totalorder %s74, %s76
    %p83 = scmp.eq.s32.totalorder %s19, 1
    %p84 = por %p82, %p83
    %p85 = scmp.ne.s32.totalorder %s76, %s77
    %p86 = scmp.eq.s32.totalorder %s19, 0
    %p87 = por %p85, %p86
    %p88 = scmp.ne.s32.totalorder %s76, %s77
    %p89 = scmp.eq.s32.totalorder %s20, 1
    %p90 = por %p88, %p89
    %p92 = scmp.ne.s32.totalorder %s77, %s91
    %p93 = scmp.eq.s32.totalorder %s20, 0
    %p94 = por %p92, %p93
    %s96 = sadd.s32 %s95, 1
    %p99 = scmp.eq.s32.totalorder %s14, 1
    %p100 = scmp.ne.s32.totalorder %s95, %s97
    %p101 = scmp.eq.s32.totalorder %s14, 0
    %p102 = por %p100, %p101
    %p103 = scmp.ne.s32.totalorder %s95, %s97
    %p104 = scmp.eq.s32.totalorder %s19, 1
    %p105 = por %p103, %p104
    %p106 = scmp.ne.s32.totalorder %s97, %s98
    %p107 = scmp.eq.s32.totalorder %s19, 0
    %p108 = por %p106, %p107
    %p109 = scmp.ne.s32.totalorder %s97, %s98
    %p110 = scmp.eq.s32.totalorder %s20, 1
    %p111 = por %p109, %p110
    %p113 = scmp.ne.s32.totalorder %s98, %s112
    %p114 = scmp.eq.s32.totalorder %s20, 0
    %p115 = por %p113, %p114
    %s117 = sadd.s32 %s116, 1
    %p120 = scmp.eq.s32.totalorder %s14, 1
    %p121 = scmp.ne.s32.totalorder %s116, %s118
    %p122 = scmp.eq.s32.totalorder %s14, 0
    %p123 = por %p121, %p122
    %p124 = scmp.ne.s32.totalorder %s116, %s118
    %p125 = scmp.eq.s32.totalorder %s19, 1
    %p126 = por %p124, %p125
    %p127 = scmp.ne.s32.totalorder %s118, %s119
    %p128 = scmp.eq.s32.totalorder %s19, 0
    %p129 = por %p127, %p128
    %p130 = scmp.ne.s32.totalorder %s118, %s119
    %p131 = scmp.eq.s32.totalorder %s20, 1
    %p132 = por %p130, %p131
    %p134 = scmp.ne.s32.totalorder %s119, %s133
    %p135 = scmp.eq.s32.totalorder %s20, 0
    %p136 = por %p134, %p135
    %s138 = sadd.s32 %s137, 1
    %p141 = scmp.eq.s32.totalorder %s14, 1
    %p142 = scmp.ne.s32.totalorder %s137, %s139
    %p143 = scmp.eq.s32.totalorder %s14, 0
    %p144 = por %p142, %p143
    %p145 = scmp.ne.s32.totalorder %s137, %s139
    %p146 = scmp.eq.s32.totalorder %s19, 1
    %p147 = por %p145, %p146
    %p148 = scmp.ne.s32.totalorder %s139, %s140
    %p149 = scmp.eq.s32.totalorder %s19, 0
    %p150 = por %p148, %p149
    %p151 = scmp.ne.s32.totalorder %s139, %s140
    %p152 = scmp.eq.s32.totalorder %s20, 1
    %p153 = por %p151, %p152
    %p155 = scmp.ne.s32.totalorder %s140, %s154
    %p156 = scmp.eq.s32.totalorder %s20, 0
    %p157 = por %p155, %p156
    %s159 = sadd.s32 %s158, 1
    %p162 = scmp.eq.s32.totalorder %s14, 1
    %p163 = scmp.ne.s32.totalorder %s158, %s160
    %p164 = scmp.eq.s32.totalorder %s14, 0
    %p165 = por %p163, %p164
    %p166 = scmp.ne.s32.totalorder %s158, %s160
    %p167 = scmp.eq.s32.totalorder %s19, 1
    %p168 = por %p166, %p167
    %p169 = scmp.ne.s32.totalorder %s160, %s161
    %p170 = scmp.eq.s32.totalorder %s19, 0
    %p171 = por %p169, %p170
    %p172 = scmp.ne.s32.totalorder %s160, %s161
    %p173 = scmp.eq.s32.totalorder %s20, 1
    %p174 = por %p172, %p173
    %p176 = scmp.ne.s32.totalorder %s161, %s175
    %p177 = scmp.eq.s32.totalorder %s20, 0
    %p178 = por %p176, %p177
    %s180 = sadd.s32 %s179, 1
    %p183 = scmp.eq.s32.totalorder %s14, 1
    %p184 = scmp.ne.s32.totalorder %s179, %s181
    %p185 = scmp.eq.s32.totalorder %s14, 0
    %p186 = por %p184, %p185
    %p187 = scmp.ne.s32.totalorder %s179, %s181
    %p188 = scmp.eq.s32.totalorder %s19, 1
    %p189 = por %p187, %p188
    %p190 = scmp.ne.s32.totalorder %s181, %s182
    %p191 = scmp.eq.s32.totalorder %s19, 0
    %p192 = por %p190, %p191
    %p193 = scmp.ne.s32.totalorder %s181, %s182
    %p194 = scmp.eq.s32.totalorder %s20, 1
    %p195 = por %p193, %p194
    %p197 = scmp.ne.s32.totalorder %s182, %s196
    %p198 = scmp.eq.s32.totalorder %s20, 0
    %p199 = por %p197, %p198
    %s200 = ssub.s32 %s14, %s21
    %p201 = scmp.eq.s32.totalorder %s200, 0
    %s203 = sadd.s32 %s202, 1
    %s204 = scalar_select %p201, %s202, %s203
    %p207 = pneg %p201
    %p208 = scmp.eq.s32.totalorder %s14, 1
    %p209 = por %p207, %p208
    %p210 = scmp.ne.s32.totalorder %s202, %s205
    %p211 = scmp.eq.s32.totalorder %s14, 0
    %p212 = por %p210, %p211
    %p213 = scmp.ne.s32.totalorder %s202, %s205
    %p214 = scmp.eq.s32.totalorder %s19, 1
    %p215 = por %p213, %p214
    %p216 = scmp.ne.s32.totalorder %s205, %s206
    %p217 = scmp.eq.s32.totalorder %s19, 0
    %p218 = por %p216, %p217
    %p219 = scmp.ne.s32.totalorder %s205, %s206
    %p220 = scmp.eq.s32.totalorder %s20, 1
    %p221 = por %p219, %p220
    %p223 = scmp.ne.s32.totalorder %s206, %s222
    %p224 = scmp.eq.s32.totalorder %s20, 0
    %p225 = por %p223, %p224
    %p226 = scmp.le.s32.totalorder 1, %s14
    %p227 = scmp.lt.s32.totalorder %s14, 3
    %p228 = pnand %p226, %p227
    %p229 = pneg %p228
    // Predicated region
    $region9: #{tpu_custom_call.1} parent=5 // pred_check
      _
    $region10: #{tpu_custom_call.1} parent=5 // pred_check_branch
      %231 = sbr.rel (%p228) target = $region12
    $region11: #{tpu_custom_call.1} parent=5 // pred_region
      %s232 = ssub.s32 %s14, 1
      // Predicated region
      $region13: #{tpu_custom_call.1} parent=11 // pred_check
        %p233 = pneg %p87
      $region14: #{tpu_custom_call.1} parent=11 // pred_check_branch
        %235 = sbr.rel (%p233) target = $region16
      $region15: #{tpu_custom_call.1} parent=11 // pred_region
        _
      $region16: #{tpu_custom_call.1} parent=11 // pred_fallthru
        _
      // Predicated region
      $region17: #{tpu_custom_call.1} parent=11 // pred_check
        %p236 = pneg %p108
      $region18: #{tpu_custom_call.1} parent=11 // pred_check_branch
        %238 = sbr.rel (%p236) target = $region20
      $region19: #{tpu_custom_call.1} parent=11 // pred_region
        _
      $region20: #{tpu_custom_call.1} parent=11 // pred_fallthru
        _
      // Predicated region
      $region21: #{tpu_custom_call.1} parent=11 // pred_check
        %p239 = pneg %p129
      $region22: #{tpu_custom_call.1} parent=11 // pred_check_branch
        %241 = sbr.rel (%p239) target = $region24
      $region23: #{tpu_custom_call.1} parent=11 // pred_region
        _
      $region24: #{tpu_custom_call.1} parent=11 // pred_fallthru
        _
      // Predicated region
      $region25: #{tpu_custom_call.1} parent=11 // pred_check
        %p242 = pneg %p150
      $region26: #{tpu_custom_call.1} parent=11 // pred_check_branch
        %244 = sbr.rel (%p242) target = $region28
      $region27: #{tpu_custom_call.1} parent=11 // pred_region
        _
      $region28: #{tpu_custom_call.1} parent=11 // pred_fallthru
        _
      // Predicated region
      $region29: #{tpu_custom_call.1} parent=11 // pred_check
        %p245 = pneg %p171
      $region30: #{tpu_custom_call.1} parent=11 // pred_check_branch
        %247 = sbr.rel (%p245) target = $region32
      $region31: #{tpu_custom_call.1} parent=11 // pred_region
        _
      $region32: #{tpu_custom_call.1} parent=11 // pred_fallthru
        _
      // Predicated region
      $region33: #{tpu_custom_call.1} parent=11 // pred_check
        %p248 = pneg %p192
      $region34: #{tpu_custom_call.1} parent=11 // pred_check_branch
        %250 = sbr.rel (%p248) target = $region36
      $region35: #{tpu_custom_call.1} parent=11 // pred_region
        _
      $region36: #{tpu_custom_call.1} parent=11 // pred_fallthru
        _
    $region12: #{tpu_custom_call.1} parent=5 // pred_fallthru
      _
    %p251 = scmp.lt.s32.totalorder %s14, 2
    // Predicated region
    $region37: #{tpu_custom_call.1} parent=5 // pred_check
      %p252 = pneg %p251
    $region38: #{tpu_custom_call.1} parent=5 // pred_check_branch
      %254 = sbr.rel (%p252) target = $region40
    $region39: #{tpu_custom_call.1} parent=5 // pred_region
      // Predicated region
      $region41: #{tpu_custom_call.1} parent=39 // pred_check
        %p255 = pneg %p34
      $region42: #{tpu_custom_call.1} parent=39 // pred_check_branch
        %257 = sbr.rel (%p255) target = $region44
      $region43: #{tpu_custom_call.1} parent=39 // pred_region
        %s258 = smul.u32 4, %s14
        %p259 = scmp.lt.s32.totalorder %s258, 7
        %s260 = scalar_select %p259, %s258, 7
        %s261 = smul.addr %s260, 8
        %s262 = scalar_lea.vmem %s0, %s261
        %s263 = smul.u32 4, %s14
      $region44: #{tpu_custom_call.1} parent=39 // pred_fallthru
        _
      // Predicated region
      $region45: #{tpu_custom_call.1} parent=39 // pred_check
        %p264 = pneg %p60
      $region46: #{tpu_custom_call.1} parent=39 // pred_check_branch
        %266 = sbr.rel (%p264) target = $region48
      $region47: #{tpu_custom_call.1} parent=39 // pred_region
        %s267 = smul.u32 4, %s14
        %p268 = scmp.lt.s32.totalorder %s267, 7
        %s269 = scalar_select %p268, %s267, 7
        %s270 = smul.addr %s269, 2
        %s271 = smul.addr %s270, 8
        %s272 = scalar_lea.vmem %s1, %s271
        %s273 = smul.u32 4, %s14
      $region48: #{tpu_custom_call.1} parent=39 // pred_fallthru
        _
    $region40: #{tpu_custom_call.1} parent=5 // pred_fallthru
      _
    %p274 = scmp.le.s32.totalorder 1, %s14
    %p275 = scmp.lt.s32.totalorder %s14, 3
    %p276 = pnand %p274, %p275
    %p277 = pneg %p276
    // Predicated region
    $region49: #{tpu_custom_call.1} parent=5 // pred_check
      _
    $region50: #{tpu_custom_call.1} parent=5 // pred_check_branch
      %279 = sbr.rel (%p276) target = $region52
    $region51: #{tpu_custom_call.1} parent=5 // pred_region
      %s280 = ssub.s32 %s14, 1
      %s281 = smul.u32 4, %s19
      %p282 = scmp.lt.s32.totalorder %s281, 7
      %s283 = scalar_select %p282, %s281, 7
      %s284 = smul.addr %s283, 8
      %s285 = scalar_lea.vmem %s0, %s284
      %p286 = pneg %p40
      %p287 = pneg %p37
      %s288 = smul.u32 4, %s19
      %p289 = scmp.lt.s32.totalorder %s288, 7
      %s290 = scalar_select %p289, %s288, 7
      %s291 = smul.addr %s290, 2
      %s292 = smul.addr %s291, 8
      %s293 = scalar_lea.vmem %s1, %s292
      %p294 = pneg %p66
      %p295 = pneg %p63
      %p296 = pneg %p87
      %p297 = pneg %p84
      %p298 = pneg %p108
      %p299 = pneg %p105
      %p300 = pneg %p129
      %p301 = pneg %p126
      %p302 = pneg %p150
      %p303 = pneg %p147
      %p304 = pneg %p171
      %p305 = pneg %p168
      %p306 = pneg %p192
      %p307 = pneg %p189
      %p308 = pneg %p218
      %p309 = pneg %p215
      %s310 = smul.u32 4, %s19
      %p311 = scmp.lt.s32.totalorder %s310, 7
      %s312 = scalar_select %p311, %s310, 7
      %s313 = smul.addr %s312, 8
      %s314 = scalar_lea.vmem %s8, %s313
      %s315 = smul.u32 4, %s19
      %p316 = scmp.lt.s32.totalorder %s315, 7
      %s317 = scalar_select %p316, %s315, 7
      %s318 = smul.addr %s317, 8
      %s319 = scalar_lea.vmem %s0, %s318
      %s320 = smul.u32 4, %s19
      %s321 = smul.u32 4, %s19
      %p322 = scmp.lt.s32.totalorder %s321, 7
      %s323 = scalar_select %p322, %s321, 7
      %s324 = smul.addr %s323, 2
      %s325 = smul.addr %s324, 8
      %s326 = scalar_lea.vmem %s1, %s325
      %s327 = smul.u32 4, %s19
      %s328 = smul.u32 4, %s19
      %p329 = scmp.lt.s32.totalorder %s328, 7
      %s330 = scalar_select %p329, %s328, 7
      %s331 = smul.addr %s330, 8
      %s332 = scalar_lea.vmem %s8, %s331
      %s333 = smul.u32 4, %s19
      %v334 = vld [vmem:[%s326] sm:$0xff]
      %v335 = vld [vmem:[%s326 + $0x8] sm:$0xff]
      %v336 = vld [vmem:[%s326 + $0x10] sm:$0xff]
      %v337 = vld [vmem:[%s326 + $0x18] sm:$0xff]
      %v338 = vld [vmem:[%s326 + $0x20] sm:$0xff]
      %v339 = vld [vmem:[%s326 + $0x28] sm:$0xff]
      %v340 = vld [vmem:[%s326 + $0x30] sm:$0xff]
      %v341 = vld [vmem:[%s326 + $0x38] sm:$0xff]
      %v342 = vld [vmem:[%s319] sm:$0xff]
      %v343 = vld [vmem:[%s319 + $0x8] sm:$0xff]
      %v344 = vld [vmem:[%s319 + $0x10] sm:$0xff]
      %v345 = vld [vmem:[%s319 + $0x18] sm:$0xff]
      %v346 = vld [vmem:[%s2] sm:$0xff]
      %v347 = vld [vmem:[%s2 + $0x8] sm:$0xff]
      %v348 = vld [vmem:[%s2 + $0x10] sm:$0xff]
      %v349 = vld [vmem:[%s2 + $0x18] sm:$0xff]
      %v350 = vld [vmem:[%s3] sm:$0x1]
      %v352 = vlaneseq
      %v353 = vshrl.u32 %v352, 7
      %v354 = vsub.s32 0, %v353
      %v355 = vrot.slane %v350, %v354
      %vm357 = vcmask 261120
      %v359 = vsel %vm357, %v342, 0
      %v362 = vsel %vm357, %v343, 0
      %v365 = vsel %vm357, %v344, 0
      %v368 = vsel %vm357, %v345, 0
      %370 = vmatprep.subr.mxu0 0.0
      %371 = vmatpush1.msra.mxu0 %v346
      %372 = vmatprep.subr.mxu0 0.0
      %373 = vmatpush1.msra.mxu0 %v347
      %374 = vmatprep.subr.mxu0 0.0
      %375 = vmatpush1.msra.mxu0 %v348
      %376 = vmatprep.subr.mxu0 0.0
      %377 = vmatpush1.msra.mxu0 %v349
      %378 = vmatprep.subr.mxu0 0.0
      %379 = vmatpush1.msra.mxu0 0.0
      %380 = vmatprep.subr.mxu0 0.0
      %381 = vmatpush1.msra.mxu0 0.0
      %382 = vmatprep.subr.mxu0 0.0
      %383 = vmatpush1.msra.mxu0 0.0
      %384 = vmatprep.subr.mxu0 0.0
      %385 = vmatpush1.msra.mxu0 0.0
      %386 = vmatprep.subr.mxu0 0.0
      %387 = vmatpush1.msra.mxu0 0.0
      %388 = vmatprep.subr.mxu0 0.0
      %389 = vmatpush1.msra.mxu0 0.0
      %390 = vmatprep.subr.mxu0 0.0
      %391 = vmatpush1.msra.mxu0 0.0
      %392 = vmatprep.subr.mxu0 0.0
      %393 = vmatpush1.msra.mxu0 0.0
      %394 = vmatprep.subr.mxu0 0.0
      %395 = vmatpush1.msra.mxu0 0.0
      %396 = vmatprep.subr.mxu0 0.0
      %397 = vmatpush1.msra.mxu0 0.0
      %398 = vmatprep.subr.mxu0 0.0
      %399 = vmatpush1.msra.mxu0 0.0
      %400 = vmatprep.subr.mxu0 0.0
      %401 = vmatpush1.msra.mxu0 0.0
      %402 = vmatprep.subr.mxu0 0.0
      %403 = vmatpush1.msra.mxu0 0.0
      %404 = vmatprep.subr.mxu0 0.0
      %405 = vmatpush1.msra.mxu0 0.0
      %406 = vmatprep.subr.mxu0 0.0
      %407 = vmatpush1.msra.mxu0 0.0
      %408 = vmatprep.subr.mxu0 0.0
      %409 = vmatpush1.msra.mxu0 0.0
      %410 = vmatprep.subr.mxu0 0.0
      %411 = vmatpush1.msra.mxu0 0.0
      %412 = vmatprep.subr.mxu0 0.0
      %413 = vmatpush1.msra.mxu0 0.0
      %414 = vmatprep.subr.mxu0 0.0
      %415 = vmatpush1.msra.mxu0 0.0
      %416 = vmatprep.subr.mxu0 0.0
      %417 = vmatpush1.msra.mxu0 0.0
      %418 = vmatprep.subr.mxu0 0.0
      %419 = vmatpush1.msra.mxu0 0.0
      %420 = vmatprep.subr.mxu0 0.0
      %421 = vmatpush1.msra.mxu0 0.0
      %422 = vmatprep.subr.mxu0 0.0
      %423 = vmatpush1.msra.mxu0 0.0
      %424 = vmatprep.subr.mxu0 0.0
      %425 = vmatpush1.msra.mxu0 0.0
      %426 = vmatprep.subr.mxu0 0.0
      %427 = vmatpush1.msra.mxu0 0.0
      %428 = vmatprep.subr.mxu0 0.0
      %429 = vmatpush1.msra.mxu0 0.0
      %430 = vmatprep.subr.mxu0 0.0
      %431 = vmatpush1.msra.mxu0 0.0
      %432 = vmatprep.subr.mxu0 0.0
      %433 = vmatpush1.msra.mxu0 0.0
      %434 = vmatprep.mubr.f32.mxu0 0.0
      %435 = vmatmul.mubr.f32.gmra.mrb[0].mxu0 %v359
      %v436 = vpop.f32.mrb[0].mxu0
      %v437 = vadd.f32 %v355, %v436
      %v438 = vpop.f32.mrb[0].mxu0
      %439 = vmatprep.mubr.f32.mxu0 0.0
      %440 = vmatmul.mubr.f32.gmra.mrb[0].mxu0 %v362
      %v441 = vpop.f32.mrb[0].mxu0
      %v442 = vadd.f32 %v355, %v441
      %v443 = vpop.f32.mrb[0].mxu0
      %444 = vmatprep.mubr.f32.mxu0 0.0
      %445 = vmatmul.mubr.f32.gmra.mrb[0].mxu0 %v365
      %v446 = vpop.f32.mrb[0].mxu0
      %v447 = vadd.f32 %v355, %v446
      %v448 = vpop.f32.mrb[0].mxu0
      %449 = vmatprep.mubr.f32.mxu0 0.0
      %450 = vmatmul.mubr.f32.gmra.mrb[0].mxu0 %v368
      %v451 = vpop.f32.mrb[0].mxu0
      %v452 = vadd.f32 %v355, %v451
      %v453 = vpop.f32.mrb[0].mxu0
      %454 = vdwg.mxu0
      %v455 = vmul.f32 %v437, 0.01
      %v456 = vmul.f32 %v442, 0.01
      %v457 = vmul.f32 %v447, 0.01
      %v458 = vmul.f32 %v452, 0.01
      %v459 = vmax.f32 %v437, %v455
      %v460 = vmax.f32 %v442, %v456
      %v461 = vmax.f32 %v447, %v457
      %v462 = vmax.f32 %v452, %v458
      %467 = vrot.lane.b32.xlu0 %v335, 32
      %v468 = vpop.permute.xlu0 %467
      %469 = vrot.lane.b32.xlu0 %v337, 32
      %v470 = vpop.permute.xlu0 %469
      %471 = vrot.lane.b32.xlu0 %v339, 32
      %v472 = vpop.permute.xlu0 %471
      %473 = vrot.lane.b32.xlu0 %v341, 32
      %v474 = vpop.permute.xlu0 %473
      %v475 = vsel %vm357, %v468, 0
      %v477 = vsel %vm357, %v470, 0
      %v479 = vsel %vm357, %v472, 0
      %v481 = vsel %vm357, %v474, 0
      %483 = vmatprep.subr.mxu0 0.0
      %484 = vmatpush1.msra.mxu0 %v346
      %485 = vmatprep.subr.mxu0 0.0
      %486 = vmatpush1.msra.mxu0 %v347
      %487 = vmatprep.subr.mxu0 0.0
      %488 = vmatpush1.msra.mxu0 %v348
      %489 = vmatprep.subr.mxu0 0.0
      %490 = vmatpush1.msra.mxu0 %v349
      %491 = vmatprep.subr.mxu0 0.0
      %492 = vmatpush1.msra.mxu0 0.0
      %493 = vmatprep.subr.mxu0 0.0
      %494 = vmatpush1.msra.mxu0 0.0
      %495 = vmatprep.subr.mxu0 0.0
      %496 = vmatpush1.msra.mxu0 0.0
      %497 = vmatprep.subr.mxu0 0.0
      %498 = vmatpush1.msra.mxu0 0.0
      %499 = vmatprep.subr.mxu0 0.0
      %500 = vmatpush1.msra.mxu0 0.0
      %501 = vmatprep.subr.mxu0 0.0
      %502 = vmatpush1.msra.mxu0 0.0
      %503 = vmatprep.subr.mxu0 0.0
      %504 = vmatpush1.msra.mxu0 0.0
      %505 = vmatprep.subr.mxu0 0.0
      %506 = vmatpush1.msra.mxu0 0.0
      %507 = vmatprep.subr.mxu0 0.0
      %508 = vmatpush1.msra.mxu0 0.0
      %509 = vmatprep.subr.mxu0 0.0
      %510 = vmatpush1.msra.mxu0 0.0
      %511 = vmatprep.subr.mxu0 0.0
      %512 = vmatpush1.msra.mxu0 0.0
      %513 = vmatprep.subr.mxu0 0.0
      %514 = vmatpush1.msra.mxu0 0.0
      %515 = vmatprep.subr.mxu0 0.0
      %516 = vmatpush1.msra.mxu0 0.0
      %517 = vmatprep.subr.mxu0 0.0
      %518 = vmatpush1.msra.mxu0 0.0
      %519 = vmatprep.subr.mxu0 0.0
      %520 = vmatpush1.msra.mxu0 0.0
      %521 = vmatprep.subr.mxu0 0.0
      %522 = vmatpush1.msra.mxu0 0.0
      %523 = vmatprep.subr.mxu0 0.0
      %524 = vmatpush1.msra.mxu0 0.0
      %525 = vmatprep.subr.mxu0 0.0
      %526 = vmatpush1.msra.mxu0 0.0
      %527 = vmatprep.subr.mxu0 0.0
      %528 = vmatpush1.msra.mxu0 0.0
      %529 = vmatprep.subr.mxu0 0.0
      %530 = vmatpush1.msra.mxu0 0.0
      %531 = vmatprep.subr.mxu0 0.0
      %532 = vmatpush1.msra.mxu0 0.0
      %533 = vmatprep.subr.mxu0 0.0
      %534 = vmatpush1.msra.mxu0 0.0
      %535 = vmatprep.subr.mxu0 0.0
      %536 = vmatpush1.msra.mxu0 0.0
      %537 = vmatprep.subr.mxu0 0.0
      %538 = vmatpush1.msra.mxu0 0.0
      %539 = vmatprep.subr.mxu0 0.0
      %540 = vmatpush1.msra.mxu0 0.0
      %541 = vmatprep.subr.mxu0 0.0
      %542 = vmatpush1.msra.mxu0 0.0
      %543 = vmatprep.subr.mxu0 0.0
      %544 = vmatpush1.msra.mxu0 0.0
      %545 = vmatprep.subr.mxu0 0.0
      %546 = vmatpush1.msra.mxu0 0.0
      %547 = vmatprep.mubr.f32.mxu0 0.0
      %548 = vmatmul.mubr.f32.gmra.mrb[0].mxu0 %v475
      %v549 = vpop.f32.mrb[0].mxu0
      %v550 = vadd.f32 %v355, %v549
      %v551 = vpop.f32.mrb[0].mxu0
      %552 = vmatprep.mubr.f32.mxu0 0.0
      %553 = vmatmul.mubr.f32.gmra.mrb[0].mxu0 %v477
      %v554 = vpop.f32.mrb[0].mxu0
      %v555 = vadd.f32 %v355, %v554
      %v556 = vpop.f32.mrb[0].mxu0
      %557 = vmatprep.mubr.f32.mxu0 0.0
      %558 = vmatmul.mubr.f32.gmra.mrb[0].mxu0 %v479
      %v559 = vpop.f32.mrb[0].mxu0
      %v560 = vadd.f32 %v355, %v559
      %v561 = vpop.f32.mrb[0].mxu0
      %562 = vmatprep.mubr.f32.mxu0 0.0
      %563 = vmatmul.mubr.f32.gmra.mrb[0].mxu0 %v481
      %v564 = vpop.f32.mrb[0].mxu0
      %v565 = vadd.f32 %v355, %v564
      %v566 = vpop.f32.mrb[0].mxu0
      %567 = vdwg.mxu0
      %v568 = vmul.f32 %v550, 0.01
      %v569 = vmul.f32 %v555, 0.01
      %v570 = vmul.f32 %v560, 0.01
      %v571 = vmul.f32 %v565, 0.01
      %v572 = vmax.f32 %v550, %v568
      %v573 = vmax.f32 %v555, %v569
      %v574 = vmax.f32 %v560, %v570
      %v575 = vmax.f32 %v565, %v571
      %v576 = vld [vmem:[%s4] sm:$0xff]
      %v577 = vld [vmem:[%s4 + $0x8] sm:$0xff]
      %v578 = vld [vmem:[%s4 + $0x10] sm:$0xff]
      %v579 = vld [vmem:[%s4 + $0x18] sm:$0xff]
      %v580 = vld [vmem:[%s5] sm:$0xff]
      %v581 = vld [vmem:[%s5 + $0x8] sm:$0xff]
      %v582 = vld [vmem:[%s5 + $0x10] sm:$0xff]
      %v583 = vld [vmem:[%s5 + $0x18] sm:$0xff]
      %v585 = vsel %vm357, %v572, 0
      %v588 = vsel %vm357, %v573, 0
      %v591 = vsel %vm357, %v574, 0
      %v594 = vsel %vm357, %v575, 0
      %596 = vmatprep.subr.mxu0 0.0
      %597 = vmatpush1.msra.mxu0 %v580
      %598 = vmatprep.subr.mxu0 0.0
      %599 = vmatpush1.msra.mxu0 %v581
      %600 = vmatprep.subr.mxu0 0.0
      %601 = vmatpush1.msra.mxu0 %v582
      %602 = vmatprep.subr.mxu0 0.0
      %603 = vmatpush1.msra.mxu0 %v583
      %604 = vmatprep.subr.mxu0 0.0
      %605 = vmatpush1.msra.mxu0 0.0
      %606 = vmatprep.subr.mxu0 0.0
      %607 = vmatpush1.msra.mxu0 0.0
      %608 = vmatprep.subr.mxu0 0.0
      %609 = vmatpush1.msra.mxu0 0.0
      %610 = vmatprep.subr.mxu0 0.0
      %611 = vmatpush1.msra.mxu0 0.0
      %612 = vmatprep.subr.mxu0 0.0
      %613 = vmatpush1.msra.mxu0 0.0
      %614 = vmatprep.subr.mxu0 0.0
      %615 = vmatpush1.msra.mxu0 0.0
      %616 = vmatprep.subr.mxu0 0.0
      %617 = vmatpush1.msra.mxu0 0.0
      %618 = vmatprep.subr.mxu0 0.0
      %619 = vmatpush1.msra.mxu0 0.0
      %620 = vmatprep.subr.mxu0 0.0
      %621 = vmatpush1.msra.mxu0 0.0
      %622 = vmatprep.subr.mxu0 0.0
      %623 = vmatpush1.msra.mxu0 0.0
      %624 = vmatprep.subr.mxu0 0.0
      %625 = vmatpush1.msra.mxu0 0.0
      %626 = vmatprep.subr.mxu0 0.0
      %627 = vmatpush1.msra.mxu0 0.0
      %628 = vmatprep.subr.mxu0 0.0
      %629 = vmatpush1.msra.mxu0 0.0
      %630 = vmatprep.subr.mxu0 0.0
      %631 = vmatpush1.msra.mxu0 0.0
      %632 = vmatprep.subr.mxu0 0.0
      %633 = vmatpush1.msra.mxu0 0.0
      %634 = vmatprep.subr.mxu0 0.0
      %635 = vmatpush1.msra.mxu0 0.0
      %636 = vmatprep.subr.mxu0 0.0
      %637 = vmatpush1.msra.mxu0 0.0
      %638 = vmatprep.subr.mxu0 0.0
      %639 = vmatpush1.msra.mxu0 0.0
      %640 = vmatprep.subr.mxu0 0.0
      %641 = vmatpush1.msra.mxu0 0.0
      %642 = vmatprep.subr.mxu0 0.0
      %643 = vmatpush1.msra.mxu0 0.0
      %644 = vmatprep.subr.mxu0 0.0
      %645 = vmatpush1.msra.mxu0 0.0
      %646 = vmatprep.subr.mxu0 0.0
      %647 = vmatpush1.msra.mxu0 0.0
      %648 = vmatprep.subr.mxu0 0.0
      %649 = vmatpush1.msra.mxu0 0.0
      %650 = vmatprep.subr.mxu0 0.0
      %651 = vmatpush1.msra.mxu0 0.0
      %652 = vmatprep.subr.mxu0 0.0
      %653 = vmatpush1.msra.mxu0 0.0
      %654 = vmatprep.subr.mxu0 0.0
      %655 = vmatpush1.msra.mxu0 0.0
      %656 = vmatprep.subr.mxu0 0.0
      %657 = vmatpush1.msra.mxu0 0.0
      %658 = vmatprep.subr.mxu0 0.0
      %659 = vmatpush1.msra.mxu0 0.0
      %660 = vmatprep.mubr.f32.mxu0 0.0
      %661 = vmatmul.mubr.f32.gmra.mrb[0].mxu0 %v585
      %v662 = vpop.f32.mrb[0].mxu0
      %v663 = vadd.f32 0.0, %v662
      %v664 = vpop.f32.mrb[0].mxu0
      %665 = vmatprep.mubr.f32.mxu0 0.0
      %666 = vmatmul.mubr.f32.gmra.mrb[0].mxu0 %v588
      %v667 = vpop.f32.mrb[0].mxu0
      %v668 = vadd.f32 0.0, %v667
      %v669 = vpop.f32.mrb[0].mxu0
      %670 = vmatprep.mubr.f32.mxu0 0.0
      %671 = vmatmul.mubr.f32.gmra.mrb[0].mxu0 %v591
      %v672 = vpop.f32.mrb[0].mxu0
      %v673 = vadd.f32 0.0, %v672
      %v674 = vpop.f32.mrb[0].mxu0
      %675 = vmatprep.mubr.f32.mxu0 0.0
      %676 = vmatmul.mubr.f32.gmra.mrb[0].mxu0 %v594
      %v677 = vpop.f32.mrb[0].mxu0
      %v678 = vadd.f32 0.0, %v677
      %v679 = vpop.f32.mrb[0].mxu0
      %680 = vdwg.mxu0
      %v682 = vsel %vm357, %v459, 0
      %v685 = vsel %vm357, %v460, 0
      %v688 = vsel %vm357, %v461, 0
      %v691 = vsel %vm357, %v462, 0
      %693 = vmatprep.subr.mxu0 0.0
      %694 = vmatpush1.msra.mxu0 %v576
      %695 = vmatprep.subr.mxu0 0.0
      %696 = vmatpush1.msra.mxu0 %v577
      %697 = vmatprep.subr.mxu0 0.0
      %698 = vmatpush1.msra.mxu0 %v578
      %699 = vmatprep.subr.mxu0 0.0
      %700 = vmatpush1.msra.mxu0 %v579
      %701 = vmatprep.subr.mxu0 0.0
      %702 = vmatpush1.msra.mxu0 0.0
      %703 = vmatprep.subr.mxu0 0.0
      %704 = vmatpush1.msra.mxu0 0.0
      %705 = vmatprep.subr.mxu0 0.0
      %706 = vmatpush1.msra.mxu0 0.0
      %707 = vmatprep.subr.mxu0 0.0
      %708 = vmatpush1.msra.mxu0 0.0
      %709 = vmatprep.subr.mxu0 0.0
      %710 = vmatpush1.msra.mxu0 0.0
      %711 = vmatprep.subr.mxu0 0.0
      %712 = vmatpush1.msra.mxu0 0.0
      %713 = vmatprep.subr.mxu0 0.0
      %714 = vmatpush1.msra.mxu0 0.0
      %715 = vmatprep.subr.mxu0 0.0
      %716 = vmatpush1.msra.mxu0 0.0
      %717 = vmatprep.subr.mxu0 0.0
      %718 = vmatpush1.msra.mxu0 0.0
      %719 = vmatprep.subr.mxu0 0.0
      %720 = vmatpush1.msra.mxu0 0.0
      %721 = vmatprep.subr.mxu0 0.0
      %722 = vmatpush1.msra.mxu0 0.0
      %723 = vmatprep.subr.mxu0 0.0
      %724 = vmatpush1.msra.mxu0 0.0
      %725 = vmatprep.subr.mxu0 0.0
      %726 = vmatpush1.msra.mxu0 0.0
      %727 = vmatprep.subr.mxu0 0.0
      %728 = vmatpush1.msra.mxu0 0.0
      %729 = vmatprep.subr.mxu0 0.0
      %730 = vmatpush1.msra.mxu0 0.0
      %731 = vmatprep.subr.mxu0 0.0
      %732 = vmatpush1.msra.mxu0 0.0
      %733 = vmatprep.subr.mxu0 0.0
      %734 = vmatpush1.msra.mxu0 0.0
      %735 = vmatprep.subr.mxu0 0.0
      %736 = vmatpush1.msra.mxu0 0.0
      %737 = vmatprep.subr.mxu0 0.0
      %738 = vmatpush1.msra.mxu0 0.0
      %739 = vmatprep.subr.mxu0 0.0
      %740 = vmatpush1.msra.mxu0 0.0
      %741 = vmatprep.subr.mxu0 0.0
      %742 = vmatpush1.msra.mxu0 0.0
      %743 = vmatprep.subr.mxu0 0.0
      %744 = vmatpush1.msra.mxu0 0.0
      %745 = vmatprep.subr.mxu0 0.0
      %746 = vmatpush1.msra.mxu0 0.0
      %747 = vmatprep.subr.mxu0 0.0
      %748 = vmatpush1.msra.mxu0 0.0
      %749 = vmatprep.subr.mxu0 0.0
      %750 = vmatpush1.msra.mxu0 0.0
      %751 = vmatprep.subr.mxu0 0.0
      %752 = vmatpush1.msra.mxu0 0.0
      %753 = vmatprep.subr.mxu0 0.0
      %754 = vmatpush1.msra.mxu0 0.0
      %755 = vmatprep.subr.mxu0 0.0
      %756 = vmatpush1.msra.mxu0 0.0
      %757 = vmatprep.mubr.f32.mxu0 0.0
      %758 = vmatmul.mubr.f32.gmra.mrb[0].mxu0 %v682
      %v759 = vpop.f32.mrb[0].mxu0
      %v760 = vadd.f32 %v663, %v759
      %v761 = vpop.f32.mrb[0].mxu0
      %762 = vmatprep.mubr.f32.mxu0 0.0
      %763 = vmatmul.mubr.f32.gmra.mrb[0].mxu0 %v685
      %v764 = vpop.f32.mrb[0].mxu0
      %v765 = vadd.f32 %v668, %v764
      %v766 = vpop.f32.mrb[0].mxu0
      %767 = vmatprep.mubr.f32.mxu0 0.0
      %768 = vmatmul.mubr.f32.gmra.mrb[0].mxu0 %v688
      %v769 = vpop.f32.mrb[0].mxu0
      %v770 = vadd.f32 %v673, %v769
      %v771 = vpop.f32.mrb[0].mxu0
      %772 = vmatprep.mubr.f32.mxu0 0.0
      %773 = vmatmul.mubr.f32.gmra.mrb[0].mxu0 %v691
      %v774 = vpop.f32.mrb[0].mxu0
      %v775 = vadd.f32 %v678, %v774
      %v776 = vpop.f32.mrb[0].mxu0
      %777 = vdwg.mxu0
      %v778 = vld [vmem:[%s6] sm:$0xff]
      %v779 = vld [vmem:[%s6 + $0x8] sm:$0xff]
      %v780 = vld [vmem:[%s6 + $0x10] sm:$0xff]
      %v781 = vld [vmem:[%s6 + $0x18] sm:$0xff]
      %v782 = vld [vmem:[%s6 + $0x20] sm:$0xff]
      %v783 = vld [vmem:[%s6 + $0x28] sm:$0xff]
      %v784 = vld [vmem:[%s6 + $0x30] sm:$0xff]
      %v785 = vld [vmem:[%s6 + $0x38] sm:$0xff]
      %v786 = vld [vmem:[%s6 + $0x40] sm:$0xff]
      %v787 = vld [vmem:[%s6 + $0x48] sm:$0xff]
      %v788 = vld [vmem:[%s6 + $0x50] sm:$0xff]
      %v789 = vld [vmem:[%s6 + $0x58] sm:$0xff]
      %v790 = vld [vmem:[%s6 + $0x60] sm:$0xff]
      %v791 = vld [vmem:[%s6 + $0x68] sm:$0xff]
      %v792 = vld [vmem:[%s6 + $0x70] sm:$0xff]
      %v793 = vld [vmem:[%s6 + $0x78] sm:$0xff]
      %v794 = vld [vmem:[%s6 + $0x80] sm:$0xff]
      %v795 = vld [vmem:[%s6 + $0x88] sm:$0xff]
      %v796 = vld [vmem:[%s6 + $0x90] sm:$0xff]
      %v797 = vld [vmem:[%s6 + $0x98] sm:$0xff]
      %v798 = vld [vmem:[%s6 + $0xa0] sm:$0xff]
      %v799 = vld [vmem:[%s6 + $0xa8] sm:$0xff]
      %v800 = vld [vmem:[%s6 + $0xb0] sm:$0xff]
      %v801 = vld [vmem:[%s6 + $0xb8] sm:$0xff]
      %v802 = vld [vmem:[%s6 + $0xc0] sm:$0xff]
      %v803 = vld [vmem:[%s6 + $0xc8] sm:$0xff]
      %v804 = vld [vmem:[%s6 + $0xd0] sm:$0xff]
      %v805 = vld [vmem:[%s6 + $0xd8] sm:$0xff]
      %v806 = vld [vmem:[%s6 + $0xe0] sm:$0xff]
      %v807 = vld [vmem:[%s6 + $0xe8] sm:$0xff]
      %v808 = vld [vmem:[%s6 + $0xf0] sm:$0xff]
      %v809 = vld [vmem:[%s6 + $0xf8] sm:$0xff]
      %810 = vmatprep.subr.mxu0 0.0
      %811 = vmatpush1.msra.mxu0 %v778
      %812 = vmatprep.subr.mxu0 0.0
      %813 = vmatpush1.msra.mxu0 %v779
      %814 = vmatprep.subr.mxu0 0.0
      %815 = vmatpush1.msra.mxu0 %v780
      %816 = vmatprep.subr.mxu0 0.0
      %817 = vmatpush1.msra.mxu0 %v781
      %818 = vmatprep.subr.mxu0 0.0
      %819 = vmatpush1.msra.mxu0 %v782
      %820 = vmatprep.subr.mxu0 0.0
      %821 = vmatpush1.msra.mxu0 %v783
      %822 = vmatprep.subr.mxu0 0.0
      %823 = vmatpush1.msra.mxu0 %v784
      %824 = vmatprep.subr.mxu0 0.0
      %825 = vmatpush1.msra.mxu0 %v785
      %826 = vmatprep.subr.mxu0 0.0
      %827 = vmatpush1.msra.mxu0 %v786
      %828 = vmatprep.subr.mxu0 0.0
      %829 = vmatpush1.msra.mxu0 %v787
      %830 = vmatprep.subr.mxu0 0.0
      %831 = vmatpush1.msra.mxu0 %v788
      %832 = vmatprep.subr.mxu0 0.0
      %833 = vmatpush1.msra.mxu0 %v789
      %834 = vmatprep.subr.mxu0 0.0
      %835 = vmatpush1.msra.mxu0 %v790
      %836 = vmatprep.subr.mxu0 0.0
      %837 = vmatpush1.msra.mxu0 %v791
      %838 = vmatprep.subr.mxu0 0.0
      %839 = vmatpush1.msra.mxu0 %v792
      %840 = vmatprep.subr.mxu0 0.0
      %841 = vmatpush1.msra.mxu0 %v793
      %842 = vmatprep.subr.mxu0 0.0
      %843 = vmatpush1.msra.mxu0 %v794
      %844 = vmatprep.subr.mxu0 0.0
      %845 = vmatpush1.msra.mxu0 %v795
      %846 = vmatprep.subr.mxu0 0.0
      %847 = vmatpush1.msra.mxu0 %v796
      %848 = vmatprep.subr.mxu0 0.0
      %849 = vmatpush1.msra.mxu0 %v797
      %850 = vmatprep.subr.mxu0 0.0
      %851 = vmatpush1.msra.mxu0 %v798
      %852 = vmatprep.subr.mxu0 0.0
      %853 = vmatpush1.msra.mxu0 %v799
      %854 = vmatprep.subr.mxu0 0.0
      %855 = vmatpush1.msra.mxu0 %v800
      %856 = vmatprep.subr.mxu0 0.0
      %857 = vmatpush1.msra.mxu0 %v801
      %858 = vmatprep.subr.mxu0 0.0
      %859 = vmatpush1.msra.mxu0 %v802
      %860 = vmatprep.subr.mxu0 0.0
      %861 = vmatpush1.msra.mxu0 %v803
      %862 = vmatprep.subr.mxu0 0.0
      %863 = vmatpush1.msra.mxu0 %v804
      %864 = vmatprep.subr.mxu0 0.0
      %865 = vmatpush1.msra.mxu0 %v805
      %866 = vmatprep.subr.mxu0 0.0
      %867 = vmatpush1.msra.mxu0 %v806
      %868 = vmatprep.subr.mxu0 0.0
      %869 = vmatpush1.msra.mxu0 %v807
      %870 = vmatprep.subr.mxu0 0.0
      %871 = vmatpush1.msra.mxu0 %v808
      %872 = vmatprep.subr.mxu0 0.0
      %873 = vmatpush1.msra.mxu0 %v809
      %874 = vmatprep.mubr.f32.mxu0 %v335
      %875 = vmatmul.mubr.f32.gmra.mrb[0].mxu0 %v334
      %v876 = vpop.f32.mrb[0].mxu0
      %v877 = vadd.f32 0.0, %v876
      %v878 = vpop.f32.mrb[0].mxu0
      %879 = vmatprep.mubr.f32.mxu0 %v337
      %880 = vmatmul.mubr.f32.gmra.mrb[0].mxu0 %v336
      %v881 = vpop.f32.mrb[0].mxu0
      %v882 = vadd.f32 0.0, %v881
      %v883 = vpop.f32.mrb[0].mxu0
      %884 = vmatprep.mubr.f32.mxu0 %v339
      %885 = vmatmul.mubr.f32.gmra.mrb[0].mxu0 %v338
      %v886 = vpop.f32.mrb[0].mxu0
      %v887 = vadd.f32 0.0, %v886
      %v888 = vpop.f32.mrb[0].mxu0
      %889 = vmatprep.mubr.f32.mxu0 %v341
      %890 = vmatmul.mubr.f32.gmra.mrb[0].mxu0 %v340
      %v891 = vpop.f32.mrb[0].mxu0
      %v892 = vadd.f32 0.0, %v891
      %v893 = vpop.f32.mrb[0].mxu0
      %894 = vdwg.mxu0
      %v895 = vadd.f32 %v760, %v877
      %v896 = vadd.f32 %v765, %v882
      %v897 = vadd.f32 %v770, %v887
      %v898 = vadd.f32 %v775, %v892
      %v899 = vld [vmem:[%s7] sm:$0x1]
      %v901 = vlaneseq
      %v902 = vshrl.u32 %v901, 7
      %v903 = vsub.s32 0, %v902
      %v904 = vrot.slane %v899, %v903
      %v906 = vadd.f32 %v895, %v904
      %v907 = vadd.f32 %v896, %v904
      %v908 = vadd.f32 %v897, %v904
      %v909 = vadd.f32 %v898, %v904
      %vm910 = vcmask 130048
      %911 = vst.msk [vmem:[%s332] sm:$0xff] %vm910, %v906
      %912 = vst.msk [vmem:[%s332 + $0x8] sm:$0xff] %vm910, %v907
      %913 = vst.msk [vmem:[%s332 + $0x10] sm:$0xff] %vm910, %v908
      %914 = vst.msk [vmem:[%s332 + $0x18] sm:$0xff] %vm910, %v909
      %s915 = smul.u32 4, %s19
      %p916 = scmp.lt.s32.totalorder %s915, 7
      %s917 = scalar_select %p916, %s915, 7
      %s918 = smul.addr %s917, 8
      %s919 = scalar_lea.vmem %s8, %s918
      // Predicated region
      $region53: #{tpu_custom_call.1} parent=51 // pred_check
        %p920 = pneg %p215
      $region54: #{tpu_custom_call.1} parent=51 // pred_check_branch
        %922 = sbr.rel (%p920) target = $region56
      $region55: #{tpu_custom_call.1} parent=51 // pred_region
        %s923 = smul.u32 4, %s19
      $region56: #{tpu_custom_call.1} parent=51 // pred_fallthru
        _
    $region52: #{tpu_custom_call.1} parent=5 // pred_fallthru
      _
    %p924 = scmp.le.s32.totalorder 2, %s14
    // Predicated region
    $region57: #{tpu_custom_call.1} parent=5 // pred_check
      %p925 = pneg %p924
    $region58: #{tpu_custom_call.1} parent=5 // pred_check_branch
      %927 = sbr.rel (%p925) target = $region60
    $region59: #{tpu_custom_call.1} parent=5 // pred_region
      %s928 = ssub.s32 %s14, 2
      // Predicated region
      $region61: #{tpu_custom_call.1} parent=59 // pred_check
        %p929 = pneg %p221
      $region62: #{tpu_custom_call.1} parent=59 // pred_check_branch
        %931 = sbr.rel (%p929) target = $region64
      $region63: #{tpu_custom_call.1} parent=59 // pred_region
        %s932 = smul.u32 4, %s20
        %p933 = scmp.lt.s32.totalorder %s932, 7
        %s934 = scalar_select %p933, %s932, 7
        %s935 = smul.addr %s934, 8
        %s936 = scalar_lea.vmem %s8, %s935
      $region64: #{tpu_custom_call.1} parent=59 // pred_fallthru
        _
    $region60: #{tpu_custom_call.1} parent=5 // pred_fallthru
      _
  $region6: #{tpu_custom_call.1} parent=0 // loop_footer
    %s18 = sadd.s32 1, %s14
  $region7: #{tpu_custom_call.1} parent=0 // loop_footer_branch
    %13 = sbr.rel target = $region3
  $region8: #{tpu_custom_call.1} parent=0 // loop_exit
    _

</llo_original>
